<compile_context>
chip_gen: v7x
topology: tpu7x:2x2x1
jax: 0.10.0
libtpu: 0.0.40
codegen_flags: <defaults>
</compile_context>

<pallas_src>
import jax
import jax.numpy as jnp
from jax.experimental import pallas as pl
from jax.experimental.pallas import tpu as pltpu


def _sobel_kernel(x_ref, o_ref):
    # x_ref block: (1, TC, H, W); drop the squeezed batch dim.
    x = x_ref[0].astype(jnp.float32)          # (TC, H, W), compute in f32
    TC, H, W = x.shape

    # Edge masks (recreate zero-padding semantics after cyclic rolls).
    row = jax.lax.broadcasted_iota(jnp.int32, (1, H, W), 1)
    col = jax.lax.broadcasted_iota(jnp.int32, (1, H, W), 2)
    top = row == 0
    bot = row == H - 1
    left = col == 0
    right = col == W - 1

    zero = jnp.float32(0.0)

    # Vertical neighbours (H = sublane axis).  roll(x, 1)[i] == x[i-1];
    # roll(x, H-1)[i] == x[i+1] (non-negative shifts only).
    up = jnp.where(top, zero, pltpu.roll(x, 1, axis=1))        # x[i-1, j]
    down = jnp.where(bot, zero, pltpu.roll(x, H - 1, axis=1))  # x[i+1, j]

    s = up + 2.0 * x + down    # vertical smooth -> feeds gx
    d = up - down              # vertical diff   -> feeds gy

    # Horizontal neighbours (W = lane axis).
    s_l = jnp.where(left, zero, pltpu.roll(s, 1, axis=2))        # s[i, j-1]
    s_r = jnp.where(right, zero, pltpu.roll(s, W - 1, axis=2))   # s[i, j+1]
    d_l = jnp.where(left, zero, pltpu.roll(d, 1, axis=2))
    d_r = jnp.where(right, zero, pltpu.roll(d, W - 1, axis=2))

    gx = s_l - s_r
    gy = d_l + 2.0 * d + d_r

    # Single store per tile; cast at the store so bf16 I/O also works.
    o_ref[0] = (jnp.abs(gx) + jnp.abs(gy)).astype(o_ref.dtype)


def _pick_channel_tile(C, H, W, itemsize, target_bytes=2 << 20):
    """Largest divisor of C whose (TC, H, W) slab is <= ~2 MiB."""
    per_channel = max(H * W * itemsize, 1)
    cap = max(1, target_bytes // per_channel)
    tc = 1
    for div in range(1, C + 1):
        if C % div == 0 and div <= cap:
            tc = div
    return tc


def sobelxy(x: jax.Array) -> jax.Array:
    """x: (N, C, H, W) -> (N, C, H, W), |sobel_x(x)| + |sobel_y(x)| depthwise."""
    N, C, H, W = x.shape
    tc = _pick_channel_tile(C, H, W, x.dtype.itemsize)
    # TODO(synk): for very large H*W (multi-MiB per channel) add H-tiling with a
    # 1-row halo; current scheme only tiles N and C.
    spec = pl.BlockSpec((1, tc, H, W), lambda n, c: (n, c, 0, 0))
    return pl.pallas_call(
        _sobel_kernel,
        out_shape=jax.ShapeDtypeStruct((N, C, H, W), x.dtype),
        grid_spec=pltpu.PrefetchScalarGridSpec(
            num_scalar_prefetch=0,
            grid=(N, C // tc),
            in_specs=[spec],
            out_specs=spec,
        ),
        compiler_params=pltpu.CompilerParams(
            dimension_semantics=("parallel", "parallel")),
    )(x)


def _sobelxy_ref(x: jax.Array) -> jax.Array:
    """Pure-JAX reference (depthwise conv via explicit padding + shifts)."""
    N, C, H, W = x.shape
    xp = jnp.pad(x, ((0, 0), (0, 0), (1, 1), (1, 1)))

    def win(di, dj):
        return xp[:, :, di:di + H, dj:dj + W]

    gx = (win(0, 0) - win(0, 2) + 2 * win(1, 0) - 2 * win(1, 2)
          + win(2, 0) - win(2, 2))
    gy = (win(0, 0) + 2 * win(0, 1) + win(0, 2)
          - win(2, 0) - 2 * win(2, 1) - win(2, 2))
    return jnp.abs(gx) + jnp.abs(gy)


if __name__ == "__main__":
    key = jax.random.PRNGKey(0)
    N, C, H, W = 2, 4, 16, 16
    x = jax.random.normal(key, (N, C, H, W), dtype=jnp.float32)

    out = sobelxy(x)
    out = jax.block_until_ready(out)

    ref = _sobelxy_ref(x)
    assert out.shape == (N, C, H, W)
    assert out.dtype == jnp.float32
    assert jnp.allclose(out, ref, atol=1e-5, rtol=1e-5)

    print("KERNEL_OK")
</pallas_src>

<mosaic_0001>
module attributes {stable_mosaic.version = 11 : i64} {
  func.func @_sobel_kernel(%arg0: i32, %arg1: i32, %arg2: memref<1x4x16x16xf32, #tpu.memory_space<vmem>>, %arg3: memref<1x4x16x16xf32, #tpu.memory_space<vmem>>) attributes {dimension_semantics = [#tpu.dimension_semantics<parallel>, #tpu.dimension_semantics<parallel>], iteration_bounds = array<i64: 2, 1>, scalar_prefetch = 0 : i64, scratch_operands = 0 : i64, tpu.core_type = #tpu.core_type<tc>, window_params = [{transform_indices = @transform_0, window_bounds = array<i64: 1, 4, 16, 16>}, {transform_indices = @transform_1, window_bounds = array<i64: 1, 4, 16, 16>}]} {
    %c0 = arith.constant 0 : index
    %c0_0 = arith.constant 0 : index
    %c0_1 = arith.constant 0 : index
    %c0_2 = arith.constant 0 : index
    %0 = vector.load %arg2[%c0, %c0_0, %c0_1, %c0_2] : memref<1x4x16x16xf32, #tpu.memory_space<vmem>>, vector<1x4x16x16xf32>
    %1 = vector.shape_cast %0 : vector<1x4x16x16xf32> to vector<4x16x16xf32>
    %2 = tpu.iota {dimensions = array<i32: 1>} : vector<1x16x16xi32>
    %3 = tpu.iota {dimensions = array<i32: 2>} : vector<1x16x16xi32>
    %c0_i32 = arith.constant 0 : i32
    %4 = vector.broadcast %c0_i32 : i32 to vector<1x16x16xi32>
    %5 = arith.cmpi eq, %2, %4 : vector<1x16x16xi32>
    %c15_i32 = arith.constant 15 : i32
    %6 = vector.broadcast %c15_i32 : i32 to vector<1x16x16xi32>
    %7 = arith.cmpi eq, %2, %6 : vector<1x16x16xi32>
    %c0_i32_3 = arith.constant 0 : i32
    %8 = vector.broadcast %c0_i32_3 : i32 to vector<1x16x16xi32>
    %9 = arith.cmpi eq, %3, %8 : vector<1x16x16xi32>
    %c15_i32_4 = arith.constant 15 : i32
    %10 = vector.broadcast %c15_i32_4 : i32 to vector<1x16x16xi32>
    %11 = arith.cmpi eq, %3, %10 : vector<1x16x16xi32>
    %c1_i32 = arith.constant 1 : i32
    %12 = tpu.dynamic_rotate %1 by %c1_i32 dim 1 : vector<4x16x16xf32>, i32 -> vector<4x16x16xf32>
    %cst = arith.constant 0.000000e+00 : f32
    %13 = vector.shape_cast %5 : vector<1x16x16xi1> to vector<1x16x16xi1>
    %14 = vector.broadcast %13 : vector<1x16x16xi1> to vector<4x16x16xi1>
    %15 = vector.broadcast %cst : f32 to vector<4x16x16xf32>
    %16 = arith.select %14, %15, %12 : vector<4x16x16xi1>, vector<4x16x16xf32>
    %c15_i32_5 = arith.constant 15 : i32
    %17 = tpu.dynamic_rotate %1 by %c15_i32_5 dim 1 : vector<4x16x16xf32>, i32 -> vector<4x16x16xf32>
    %cst_6 = arith.constant 0.000000e+00 : f32
    %18 = vector.shape_cast %7 : vector<1x16x16xi1> to vector<1x16x16xi1>
    %19 = vector.broadcast %18 : vector<1x16x16xi1> to vector<4x16x16xi1>
    %20 = vector.broadcast %cst_6 : f32 to vector<4x16x16xf32>
    %21 = arith.select %19, %20, %17 : vector<4x16x16xi1>, vector<4x16x16xf32>
    %cst_7 = arith.constant 2.000000e+00 : f32
    %22 = vector.broadcast %cst_7 : f32 to vector<4x16x16xf32>
    %23 = arith.mulf %22, %1 : vector<4x16x16xf32>
    %24 = arith.addf %16, %23 : vector<4x16x16xf32>
    %25 = arith.addf %24, %21 : vector<4x16x16xf32>
    %26 = arith.subf %16, %21 : vector<4x16x16xf32>
    %c1_i32_8 = arith.constant 1 : i32
    %27 = tpu.dynamic_rotate %25 by %c1_i32_8 dim 2 : vector<4x16x16xf32>, i32 -> vector<4x16x16xf32>
    %cst_9 = arith.constant 0.000000e+00 : f32
    %28 = vector.shape_cast %9 : vector<1x16x16xi1> to vector<1x16x16xi1>
    %29 = vector.broadcast %28 : vector<1x16x16xi1> to vector<4x16x16xi1>
    %30 = vector.broadcast %cst_9 : f32 to vector<4x16x16xf32>
    %31 = arith.select %29, %30, %27 : vector<4x16x16xi1>, vector<4x16x16xf32>
    %c15_i32_10 = arith.constant 15 : i32
    %32 = tpu.dynamic_rotate %25 by %c15_i32_10 dim 2 : vector<4x16x16xf32>, i32 -> vector<4x16x16xf32>
    %cst_11 = arith.constant 0.000000e+00 : f32
    %33 = vector.shape_cast %11 : vector<1x16x16xi1> to vector<1x16x16xi1>
    %34 = vector.broadcast %33 : vector<1x16x16xi1> to vector<4x16x16xi1>
    %35 = vector.broadcast %cst_11 : f32 to vector<4x16x16xf32>
    %36 = arith.select %34, %35, %32 : vector<4x16x16xi1>, vector<4x16x16xf32>
    %c1_i32_12 = arith.constant 1 : i32
    %37 = tpu.dynamic_rotate %26 by %c1_i32_12 dim 2 : vector<4x16x16xf32>, i32 -> vector<4x16x16xf32>
    %cst_13 = arith.constant 0.000000e+00 : f32
    %38 = vector.shape_cast %9 : vector<1x16x16xi1> to vector<1x16x16xi1>
    %39 = vector.broadcast %38 : vector<1x16x16xi1> to vector<4x16x16xi1>
    %40 = vector.broadcast %cst_13 : f32 to vector<4x16x16xf32>
    %41 = arith.select %39, %40, %37 : vector<4x16x16xi1>, vector<4x16x16xf32>
    %c15_i32_14 = arith.constant 15 : i32
    %42 = tpu.dynamic_rotate %26 by %c15_i32_14 dim 2 : vector<4x16x16xf32>, i32 -> vector<4x16x16xf32>
    %cst_15 = arith.constant 0.000000e+00 : f32
    %43 = vector.shape_cast %11 : vector<1x16x16xi1> to vector<1x16x16xi1>
    %44 = vector.broadcast %43 : vector<1x16x16xi1> to vector<4x16x16xi1>
    %45 = vector.broadcast %cst_15 : f32 to vector<4x16x16xf32>
    %46 = arith.select %44, %45, %42 : vector<4x16x16xi1>, vector<4x16x16xf32>
    %47 = arith.subf %31, %36 : vector<4x16x16xf32>
    %cst_16 = arith.constant 2.000000e+00 : f32
    %48 = vector.broadcast %cst_16 : f32 to vector<4x16x16xf32>
    %49 = arith.mulf %48, %26 : vector<4x16x16xf32>
    %50 = arith.addf %41, %49 : vector<4x16x16xf32>
    %51 = arith.addf %50, %46 : vector<4x16x16xf32>
    %52 = math.absf %47 : vector<4x16x16xf32>
    %53 = math.absf %51 : vector<4x16x16xf32>
    %54 = arith.addf %52, %53 : vector<4x16x16xf32>
    %c0_17 = arith.constant 0 : index
    %c0_18 = arith.constant 0 : index
    %c0_19 = arith.constant 0 : index
    %c0_20 = arith.constant 0 : index
    %55 = vector.load %arg3[%c0_17, %c0_18, %c0_19, %c0_20] : memref<1x4x16x16xf32, #tpu.memory_space<vmem>>, vector<1x4x16x16xf32>
    %56 = vector.shape_cast %55 : vector<1x4x16x16xf32> to vector<4x16x16xf32>
    %57 = vector.shape_cast %54 : vector<4x16x16xf32> to vector<1x4x16x16xf32>
    tpu.vector_store %arg3[%c0_17, %c0_18, %c0_19, %c0_20], %57 {strides = array<i32>} : memref<1x4x16x16xf32, #tpu.memory_space<vmem>>, vector<1x4x16x16xf32>,
    return
  }
  func.func @transform_0(%arg0: i32, %arg1: i32) -> (i32, i32, i32, i32) {
    %c0_i32 = arith.constant 0 : i32
    %c0_i32_0 = arith.constant 0 : i32
    %c0_i32_1 = arith.constant 0 : i32
    return %arg0, %arg1, %c0_i32, %c0_i32_0 : i32, i32, i32, i32
  }
  func.func @transform_1(%arg0: i32, %arg1: i32) -> (i32, i32, i32, i32) {
    %c0_i32 = arith.constant 0 : i32
    %c0_i32_0 = arith.constant 0 : i32
    %c0_i32_1 = arith.constant 0 : i32
    return %arg0, %arg1, %c0_i32, %c0_i32_0 : i32, i32, i32, i32
  }
}

</mosaic_0001>

<llo_original>
// kernel: tpu_custom_call.1
$region0: #{tpu_custom_call.1}
  #allocation0 [shape = 'u32[]', space=smem, size = 0x4, offset = 0x4, fixed_abs, tag = 'smem constant byte address 0x4 - core index']
  #allocation1 [shape = 'u32[144,128]{1,0:T(1,128)}', space=vmem, size = 0x12000, scoped, tag = 'internal scratch']
  %s0 = inlined_call_operand.hbm [shape: f32[2,4,16,16], index: 0, kind: input, shape index: {}]
  %s1 = inlined_call_operand.hbm [shape: f32[2,4,16,16], index: 1, kind: output, shape index: {}]
  %s2 = sld [smem:[#allocation0]]
  $region41: #{tpu_custom_call.1} parent=0
    _
  %s4 = ssub.s32 1, %s2
  %s5 = scalar_select 0, %s4, %s2
  $region1: #{tpu_custom_call.1} parent=0
    #allocation2 [shape = 'u8[65536]{0}', space=vmem, size = 0x10000, scoped, tag = 'input window, operand 0']
    #allocation3 [shape = 's32[2]{0}', space=sflag, size = 0x8, scoped, tag = 'scoped memory for tpu_custom_call.1']
    #allocation4 [shape = 's32[2]{0}', space=sflag, size = 0x8, scoped, tag = 'scoped memory for tpu_custom_call.1']
    #allocation5 [shape = 'u8[65536]{0}', space=vmem, size = 0x10000, scoped, tag = 'output window, operand 0']
    %6 = vsyncpa [#allocation3], 0
    %s7 = scalar_lea.sflag [#allocation3], 1
    %8 = vsyncpa %s7, 0
    %9 = vsyncpa [#allocation4], 0
    %s10 = scalar_lea.sflag [#allocation4], 1
    %11 = vsyncpa %s10, 0
    loop: start=0, step=1, limit=4
    $region2: #{tpu_custom_call.1} parent=1 // loop_pre_header
      _
    $region3: #{tpu_custom_call.1} parent=1 // loop_header
      %s13 = sphi 0, %s17
      %p14 = scmp.ge.s32.totalorder %s13, 4
      %s20 = sphi 0, %s32
      %s21 = sphi 0, %s28
      %s22 = sphi 0, %s20
      %s23 = sphi 0, %s21
      %s24 = sphi 0, %s22
      %s25 = sphi 0, %s23
      %s37 = sphi 0, %s39
      %s40 = sphi 0, %s37
      %s41 = sphi 0, %s40
      %s57 = sphi 0, %s41
      %s65 = sphi 0, %s67
      %s68 = sphi 0, %s65
      %s69 = sphi 0, %s68
      %s85 = sphi 0, %s69
    $region4: #{tpu_custom_call.1} parent=1 // loop_header_branch
      %16 = sbr.rel (%p14) target = $region8
    $region5: #{tpu_custom_call.1} parent=1 // loop_body
      %s18 = ssub.s32 %s13, 1
      %s19 = ssub.s32 %s13, 2
      %s26 = sadd.s32 1, %s21
      %p27 = scmp.ge.s32.totalorder %s26, 1
      %s28 = scalar_select %p27, 0, %s26
      %s29 = sadd.s32 1, %s20
      %s30 = scalar_select %p27, %s29, %s20
      %p31 = scmp.ge.s32.totalorder %s30, 2
      %s32 = scalar_select %p31, 0, %s30
      %s33 = ssub.s32 %s20, %s32
      %s34 = ssub.s32 %s21, %s28
      %s35 = sor.u32 %s33, %s34
      %p36 = scmp.eq.s32.totalorder %s35, 0
      %s38 = sadd.s32 %s37, 1
      %s39 = scalar_select %p36, %s37, %s38
      %p42 = pneg %p36
      %p43 = scmp.eq.s32.totalorder %s13, 1
      %p44 = por %p42, %p43
      %p45 = scmp.ne.s32.totalorder %s37, %s40
      %p46 = scmp.eq.s32.totalorder %s13, 0
      %p47 = por %p45, %p46
      %p48 = scmp.ne.s32.totalorder %s37, %s40
      %p49 = scmp.eq.s32.totalorder %s18, 1
      %p50 = por %p48, %p49
      %p51 = scmp.ne.s32.totalorder %s40, %s41
      %p52 = scmp.eq.s32.totalorder %s18, 0
      %p53 = por %p51, %p52
      %p54 = scmp.ne.s32.totalorder %s40, %s41
      %p55 = scmp.eq.s32.totalorder %s19, 1
      %p56 = por %p54, %p55
      %p58 = scmp.ne.s32.totalorder %s41, %s57
      %p59 = scmp.eq.s32.totalorder %s19, 0
      %p60 = por %p58, %p59
      %s61 = ssub.s32 %s20, %s32
      %s62 = ssub.s32 %s21, %s28
      %s63 = sor.u32 %s61, %s62
      %p64 = scmp.eq.s32.totalorder %s63, 0
      %s66 = sadd.s32 %s65, 1
      %s67 = scalar_select %p64, %s65, %s66
      %p70 = pneg %p64
      %p71 = scmp.eq.s32.totalorder %s13, 1
      %p72 = por %p70, %p71
      %p73 = scmp.ne.s32.totalorder %s65, %s68
      %p74 = scmp.eq.s32.totalorder %s13, 0
      %p75 = por %p73, %p74
      %p76 = scmp.ne.s32.totalorder %s65, %s68
      %p77 = scmp.eq.s32.totalorder %s18, 1
      %p78 = por %p76, %p77
      %p79 = scmp.ne.s32.totalorder %s68, %s69
      %p80 = scmp.eq.s32.totalorder %s18, 0
      %p81 = por %p79, %p80
      %p82 = scmp.ne.s32.totalorder %s68, %s69
      %p83 = scmp.eq.s32.totalorder %s19, 1
      %p84 = por %p82, %p83
      %p86 = scmp.ne.s32.totalorder %s69, %s85
      %p87 = scmp.eq.s32.totalorder %s19, 0
      %p88 = por %p86, %p87
      %p89 = scmp.le.s32.totalorder 1, %s13
      %p90 = scmp.lt.s32.totalorder %s13, 3
      %p91 = pnand %p89, %p90
      %p92 = pneg %p91
      // Predicated region
      $region9: #{tpu_custom_call.1} parent=5 // pred_check
        _
      $region10: #{tpu_custom_call.1} parent=5 // pred_check_branch
        %94 = sbr.rel (%p91) target = $region12
      $region11: #{tpu_custom_call.1} parent=5 // pred_region
        %s95 = ssub.s32 %s13, 1
      $region12: #{tpu_custom_call.1} parent=5 // pred_fallthru
        _
      %p96 = scmp.lt.s32.totalorder %s13, 2
      // Predicated region
      $region13: #{tpu_custom_call.1} parent=5 // pred_check
        %p97 = pneg %p96
      $region14: #{tpu_custom_call.1} parent=5 // pred_check_branch
        %99 = sbr.rel (%p97) target = $region16
      $region15: #{tpu_custom_call.1} parent=5 // pred_region
        // Predicated region
        $region17: #{tpu_custom_call.1} parent=15 // pred_check
          %p100 = pneg %p47
        $region18: #{tpu_custom_call.1} parent=15 // pred_check_branch
          %102 = sbr.rel (%p100) target = $region20
        $region19: #{tpu_custom_call.1} parent=15 // pred_region
          %s103 = sand.u32 %s37, 1
          %s104 = scalar_lea.sflag [#allocation3], %s103
          %s105 = sand.u32 %s37, 1
          %s106 = smul.addr %s105, 64
          %s107 = scalar_lea.vmem [#allocation2], %s106
          %s108 = smul.u32 4, %s21
          %s110 = ssub.s32 1024, 1024
          %111 = vsyncadd %s104, %s110
          %s112 = smul.addr %s108, 2
          %s113 = smul.addr %s20, 8
          %s114 = sadd.s32 %s112, %s113
          %s115 = smul.addr %s114, 128
          %s116 = scalar_lea.hbm %s0, %s115
          %s117 = sshll.u32 %s107, 4
          %s118 = int_to_ptr.vmem [resolvable:$true] %s117
          %123 = dma.hbm_to_vmem [thread:$0]  %s116, 1024, %s118, %s104, 128, 128, 8
        $region20: #{tpu_custom_call.1} parent=15 // pred_fallthru
          _
      $region16: #{tpu_custom_call.1} parent=5 // pred_fallthru
        _
      %p124 = scmp.le.s32.totalorder 1, %s13
      %p125 = scmp.lt.s32.totalorder %s13, 3
      %p126 = pnand %p124, %p125
      %p127 = pneg %p126
      // Predicated region
      $region21: #{tpu_custom_call.1} parent=5 // pred_check
        _
      $region22: #{tpu_custom_call.1} parent=5 // pred_check_branch
        %129 = sbr.rel (%p126) target = $region24
      $region23: #{tpu_custom_call.1} parent=5 // pred_region
        %s130 = ssub.s32 %s13, 1
        %s131 = sand.u32 %s40, 1
        %s132 = scalar_lea.sflag [#allocation3], %s131
        %s133 = sand.u32 %s40, 1
        %s134 = smul.addr %s133, 64
        %s135 = scalar_lea.vmem [#allocation2], %s134
        // Predicated region
        $region25: #{tpu_custom_call.1} parent=23 // pred_check
          %p136 = pneg %p53
        $region26: #{tpu_custom_call.1} parent=23 // pred_check_branch
          %138 = sbr.rel (%p136) target = $region28
        $region27: #{tpu_custom_call.1} parent=23 // pred_region
          %139 = dma.done %s132, 1024
        $region28: #{tpu_custom_call.1} parent=23 // pred_fallthru
          _
        %s140 = sand.u32 %s40, 1
        %s141 = scalar_lea.sflag [#allocation3], %s140
        %s142 = sand.u32 %s40, 1
        %s143 = smul.addr %s142, 64
        %s144 = scalar_lea.vmem [#allocation2], %s143
        %p145 = pneg %p53
        %p146 = pneg %p50
        %p147 = pneg %p81
        %p148 = pneg %p78
        %s149 = sand.u32 %s68, 1
        %s150 = scalar_lea.sflag [#allocation4], %s149
        %s151 = sand.u32 %s68, 1
        %s152 = smul.addr %s151, 64
        %s153 = scalar_lea.vmem [#allocation5], %s152
        %s154 = smul.u32 4, %s23
        %s155 = smul.u32 4, %s23
        %v156 = vld [vmem:[%s135] sm:$0xff]
        %v157 = vld [vmem:[%s135 + $0x8] sm:$0xff]
        %v158 = vld [vmem:[%s135 + $0x10] sm:$0xff]
        %v159 = vld [vmem:[%s135 + $0x18] sm:$0xff]
        %v160 = vld [vmem:[%s135 + $0x20] sm:$0xff]
        %v161 = vld [vmem:[%s135 + $0x28] sm:$0xff]
        %v162 = vld [vmem:[%s135 + $0x30] sm:$0xff]
        %v163 = vld [vmem:[%s135 + $0x38] sm:$0xff]
        %v164 = vlaneseq
        %v165 = vshrl.u32 %v164, 7
        %v166 = vadd.s32 %v165, 8
        %v167 = vlaneseq
        %v168 = vand.u32 %v167, 127
        %vm169 = vcmp.eq.s32.totalorder %v165, 0
        %vm170 = vcmp.eq.s32.totalorder %v166, 0
        %vm171 = vcmp.eq.s32.totalorder %v165, 15
        %vm172 = vcmp.eq.s32.totalorder %v166, 15
        %vm173 = vcmp.eq.s32.totalorder %v168, 0
        %vm174 = vcmp.eq.s32.totalorder %v168, 15
        %v175 = vrot.slane %v156, 7
        %v176 = vrot.slane %v158, 7
        %v177 = vrot.slane %v160, 7
        %v178 = vrot.slane %v162, 7
        %v179 = vrot.slane %v157, 7
        %v180 = vrot.slane %v159, 7
        %v181 = vrot.slane %v161, 7
        %v182 = vrot.slane %v163, 7
        %vm183 = vcmp.lt.s32.totalorder %v165, 1
        %v184 = vsel %vm183, %v175, %v179
        %v185 = vsel %vm183, %v176, %v180
        %v186 = vsel %vm183, %v177, %v181
        %v187 = vsel %vm183, %v178, %v182
        %v188 = vsel %vm183, %v179, %v175
        %v189 = vsel %vm183, %v180, %v176
        %v190 = vsel %vm183, %v181, %v177
        %v191 = vsel %vm183, %v182, %v178
        %v192 = vsel %vm169, 1, 0
        %v193 = vsel %vm170, 1, 0
        %vm194 = vcmp.eq.s32.totalorder %v192, 1
        %vm195 = vcmp.eq.s32.totalorder %v193, 1
        %v196 = vsel %vm194, 0.0, %v188
        %v197 = vsel %vm195, 0.0, %v184
        %v198 = vsel %vm194, 0.0, %v189
        %v199 = vsel %vm195, 0.0, %v185
        %v200 = vsel %vm194, 0.0, %v190
        %v201 = vsel %vm195, 0.0, %v186
        %v202 = vsel %vm194, 0.0, %v191
        %v203 = vsel %vm195, 0.0, %v187
        %v204 = vrot.slane %v156, 1
        %v205 = vrot.slane %v158, 1
        %v206 = vrot.slane %v160, 1
        %v207 = vrot.slane %v162, 1
        %v208 = vrot.slane %v157, 1
        %v209 = vrot.slane %v159, 1
        %v210 = vrot.slane %v161, 1
        %v211 = vrot.slane %v163, 1
        %vm212 = vcmp.lt.s32.totalorder %v165, 7
        %v213 = vsel %vm212, %v204, %v208
        %v214 = vsel %vm212, %v205, %v209
        %v215 = vsel %vm212, %v206, %v210
        %v216 = vsel %vm212, %v207, %v211
        %v217 = vsel %vm212, %v208, %v204
        %v218 = vsel %vm212, %v209, %v205
        %v219 = vsel %vm212, %v210, %v206
        %v220 = vsel %vm212, %v211, %v207
        %v221 = vsel %vm171, 1, 0
        %v222 = vsel %vm172, 1, 0
        %vm223 = vcmp.eq.s32.totalorder %v221, 1
        %vm224 = vcmp.eq.s32.totalorder %v222, 1
        %v225 = vsel %vm223, 0.0, %v213
        %v226 = vsel %vm224, 0.0, %v217
        %v227 = vsel %vm223, 0.0, %v214
        %v228 = vsel %vm224, 0.0, %v218
        %v229 = vsel %vm223, 0.0, %v215
        %v230 = vsel %vm224, 0.0, %v219
        %v231 = vsel %vm223, 0.0, %v216
        %v232 = vsel %vm224, 0.0, %v220
        %v233 = vmul.f32 %v156, 2.0
        %v234 = vmul.f32 %v157, 2.0
        %v235 = vmul.f32 %v158, 2.0
        %v236 = vmul.f32 %v159, 2.0
        %v237 = vmul.f32 %v160, 2.0
        %v238 = vmul.f32 %v161, 2.0
        %v239 = vmul.f32 %v162, 2.0
        %v240 = vmul.f32 %v163, 2.0
        %v241 = vadd.f32 %v196, %v233
        %v242 = vadd.f32 %v197, %v234
        %v243 = vadd.f32 %v198, %v235
        %v244 = vadd.f32 %v199, %v236
        %v245 = vadd.f32 %v200, %v237
        %v246 = vadd.f32 %v201, %v238
        %v247 = vadd.f32 %v202, %v239
        %v248 = vadd.f32 %v203, %v240
        %v249 = vadd.f32 %v241, %v225
        %v250 = vadd.f32 %v242, %v226
        %v251 = vadd.f32 %v243, %v227
        %v252 = vadd.f32 %v244, %v228
        %v253 = vadd.f32 %v245, %v229
        %v254 = vadd.f32 %v246, %v230
        %v255 = vadd.f32 %v247, %v231
        %v256 = vadd.f32 %v248, %v232
        %v257 = vsub.f32 %v196, %v225
        %v258 = vsub.f32 %v197, %v226
        %v259 = vsub.f32 %v198, %v227
        %v260 = vsub.f32 %v199, %v228
        %v261 = vsub.f32 %v200, %v229
        %v262 = vsub.f32 %v201, %v230
        %v263 = vsub.f32 %v202, %v231
        %v264 = vsub.f32 %v203, %v232
        %vm265 = vcmask 1047680
        %266 = vrot.lane.b32.xlu0 %v249, 16
        %v267 = vpop.permute.xlu0 %266
        %v268 = vsel %vm265, %v267, %v249
        %269 = vrot.lane.b32.xlu0 %v250, 16
        %v270 = vpop.permute.xlu0 %269
        %v271 = vsel %vm265, %v270, %v250
        %272 = vrot.lane.b32.xlu0 %v251, 16
        %v273 = vpop.permute.xlu0 %272
        %v274 = vsel %vm265, %v273, %v251
        %275 = vrot.lane.b32.xlu0 %v252, 16
        %v276 = vpop.permute.xlu0 %275
        %v277 = vsel %vm265, %v276, %v252
        %278 = vrot.lane.b32.xlu0 %v253, 16
        %v279 = vpop.permute.xlu0 %278
        %v280 = vsel %vm265, %v279, %v253
        %281 = vrot.lane.b32.xlu0 %v254, 16
        %v282 = vpop.permute.xlu0 %281
        %v283 = vsel %vm265, %v282, %v254
        %284 = vrot.lane.b32.xlu0 %v255, 16
        %v285 = vpop.permute.xlu0 %284
        %v286 = vsel %vm265, %v285, %v255
        %287 = vrot.lane.b32.xlu0 %v256, 16
        %v288 = vpop.permute.xlu0 %287
        %v289 = vsel %vm265, %v288, %v256
        %290 = vrot.lane.b32.xlu0 %v268, 16
        %v291 = vpop.permute.xlu0 %290
        %292 = vrot.lane.b32.xlu0 %v271, 16
        %v293 = vpop.permute.xlu0 %292
        %294 = vrot.lane.b32.xlu0 %v274, 16
        %v295 = vpop.permute.xlu0 %294
        %296 = vrot.lane.b32.xlu0 %v277, 16
        %v297 = vpop.permute.xlu0 %296
        %298 = vrot.lane.b32.xlu0 %v280, 16
        %v299 = vpop.permute.xlu0 %298
        %300 = vrot.lane.b32.xlu0 %v283, 16
        %v301 = vpop.permute.xlu0 %300
        %302 = vrot.lane.b32.xlu0 %v286, 16
        %v303 = vpop.permute.xlu0 %302
        %304 = vrot.lane.b32.xlu0 %v289, 16
        %v305 = vpop.permute.xlu0 %304
        %v306 = vsel %vm265, %v291, %v249
        %v307 = vsel %vm265, %v293, %v250
        %v308 = vsel %vm265, %v295, %v251
        %v309 = vsel %vm265, %v297, %v252
        %v310 = vsel %vm265, %v299, %v253
        %v311 = vsel %vm265, %v301, %v254
        %v312 = vsel %vm265, %v303, %v255
        %v313 = vsel %vm265, %v305, %v256
        %v314 = vsel %vm173, 1, 0
        %vm315 = vcmp.eq.s32.totalorder %v314, 1
        %324 = vrot.lane.b32.xlu0 %v306, 113
        %v325 = vpop.permute.xlu0 %324
        %326 = vrot.lane.b32.xlu0 %v307, 113
        %v327 = vpop.permute.xlu0 %326
        %328 = vrot.lane.b32.xlu0 %v308, 113
        %v329 = vpop.permute.xlu0 %328
        %330 = vrot.lane.b32.xlu0 %v309, 113
        %v331 = vpop.permute.xlu0 %330
        %332 = vrot.lane.b32.xlu0 %v310, 113
        %v333 = vpop.permute.xlu0 %332
        %334 = vrot.lane.b32.xlu0 %v311, 113
        %v335 = vpop.permute.xlu0 %334
        %336 = vrot.lane.b32.xlu0 %v312, 113
        %v337 = vpop.permute.xlu0 %336
        %338 = vrot.lane.b32.xlu0 %v313, 113
        %v339 = vpop.permute.xlu0 %338
        %v348 = vsel %vm315, 0.0, %v325
        %v349 = vsel %vm315, 0.0, %v327
        %v350 = vsel %vm315, 0.0, %v329
        %v351 = vsel %vm315, 0.0, %v331
        %v352 = vsel %vm315, 0.0, %v333
        %v353 = vsel %vm315, 0.0, %v335
        %v354 = vsel %vm315, 0.0, %v337
        %v355 = vsel %vm315, 0.0, %v339
        %v356 = vsel %vm174, 1, 0
        %vm357 = vcmp.eq.s32.totalorder %v356, 1
        %358 = vrot.lane.b32.xlu0 %v306, 127
        %v359 = vpop.permute.xlu0 %358
        %360 = vrot.lane.b32.xlu0 %v307, 127
        %v361 = vpop.permute.xlu0 %360
        %362 = vrot.lane.b32.xlu0 %v308, 127
        %v363 = vpop.permute.xlu0 %362
        %364 = vrot.lane.b32.xlu0 %v309, 127
        %v365 = vpop.permute.xlu0 %364
        %366 = vrot.lane.b32.xlu0 %v310, 127
        %v367 = vpop.permute.xlu0 %366
        %368 = vrot.lane.b32.xlu0 %v311, 127
        %v369 = vpop.permute.xlu0 %368
        %370 = vrot.lane.b32.xlu0 %v312, 127
        %v371 = vpop.permute.xlu0 %370
        %372 = vrot.lane.b32.xlu0 %v313, 127
        %v373 = vpop.permute.xlu0 %372
        %v382 = vsel %vm357, 0.0, %v359
        %v383 = vsel %vm357, 0.0, %v361
        %v384 = vsel %vm357, 0.0, %v363
        %v385 = vsel %vm357, 0.0, %v365
        %v386 = vsel %vm357, 0.0, %v367
        %v387 = vsel %vm357, 0.0, %v369
        %v388 = vsel %vm357, 0.0, %v371
        %v389 = vsel %vm357, 0.0, %v373
        %390 = vrot.lane.b32.xlu0 %v257, 16
        %v391 = vpop.permute.xlu0 %390
        %v392 = vsel %vm265, %v391, %v257
        %393 = vrot.lane.b32.xlu0 %v258, 16
        %v394 = vpop.permute.xlu0 %393
        %v395 = vsel %vm265, %v394, %v258
        %396 = vrot.lane.b32.xlu0 %v259, 16
        %v397 = vpop.permute.xlu0 %396
        %v398 = vsel %vm265, %v397, %v259
        %399 = vrot.lane.b32.xlu0 %v260, 16
        %v400 = vpop.permute.xlu0 %399
        %v401 = vsel %vm265, %v400, %v260
        %402 = vrot.lane.b32.xlu0 %v261, 16
        %v403 = vpop.permute.xlu0 %402
        %v404 = vsel %vm265, %v403, %v261
        %405 = vrot.lane.b32.xlu0 %v262, 16
        %v406 = vpop.permute.xlu0 %405
        %v407 = vsel %vm265, %v406, %v262
        %408 = vrot.lane.b32.xlu0 %v263, 16
        %v409 = vpop.permute.xlu0 %408
        %v410 = vsel %vm265, %v409, %v263
        %411 = vrot.lane.b32.xlu0 %v264, 16
        %v412 = vpop.permute.xlu0 %411
        %v413 = vsel %vm265, %v412, %v264
        %414 = vrot.lane.b32.xlu0 %v392, 16
        %v415 = vpop.permute.xlu0 %414
        %416 = vrot.lane.b32.xlu0 %v395, 16
        %v417 = vpop.permute.xlu0 %416
        %418 = vrot.lane.b32.xlu0 %v398, 16
        %v419 = vpop.permute.xlu0 %418
        %420 = vrot.lane.b32.xlu0 %v401, 16
        %v421 = vpop.permute.xlu0 %420
        %422 = vrot.lane.b32.xlu0 %v404, 16
        %v423 = vpop.permute.xlu0 %422
        %424 = vrot.lane.b32.xlu0 %v407, 16
        %v425 = vpop.permute.xlu0 %424
        %426 = vrot.lane.b32.xlu0 %v410, 16
        %v427 = vpop.permute.xlu0 %426
        %428 = vrot.lane.b32.xlu0 %v413, 16
        %v429 = vpop.permute.xlu0 %428
        %v430 = vsel %vm265, %v415, %v257
        %v431 = vsel %vm265, %v417, %v258
        %v432 = vsel %vm265, %v419, %v259
        %v433 = vsel %vm265, %v421, %v260
        %v434 = vsel %vm265, %v423, %v261
        %v435 = vsel %vm265, %v425, %v262
        %v436 = vsel %vm265, %v427, %v263
        %v437 = vsel %vm265, %v429, %v264
        %446 = vrot.lane.b32.xlu0 %v430, 113
        %v447 = vpop.permute.xlu0 %446
        %448 = vrot.lane.b32.xlu0 %v431, 113
        %v449 = vpop.permute.xlu0 %448
        %450 = vrot.lane.b32.xlu0 %v432, 113
        %v451 = vpop.permute.xlu0 %450
        %452 = vrot.lane.b32.xlu0 %v433, 113
        %v453 = vpop.permute.xlu0 %452
        %454 = vrot.lane.b32.xlu0 %v434, 113
        %v455 = vpop.permute.xlu0 %454
        %456 = vrot.lane.b32.xlu0 %v435, 113
        %v457 = vpop.permute.xlu0 %456
        %458 = vrot.lane.b32.xlu0 %v436, 113
        %v459 = vpop.permute.xlu0 %458
        %460 = vrot.lane.b32.xlu0 %v437, 113
        %v461 = vpop.permute.xlu0 %460
        %v470 = vsel %vm315, 0.0, %v447
        %v471 = vsel %vm315, 0.0, %v449
        %v472 = vsel %vm315, 0.0, %v451
        %v473 = vsel %vm315, 0.0, %v453
        %v474 = vsel %vm315, 0.0, %v455
        %v475 = vsel %vm315, 0.0, %v457
        %v476 = vsel %vm315, 0.0, %v459
        %v477 = vsel %vm315, 0.0, %v461
        %478 = vrot.lane.b32.xlu0 %v430, 127
        %v479 = vpop.permute.xlu0 %478
        %480 = vrot.lane.b32.xlu0 %v431, 127
        %v481 = vpop.permute.xlu0 %480
        %482 = vrot.lane.b32.xlu0 %v432, 127
        %v483 = vpop.permute.xlu0 %482
        %484 = vrot.lane.b32.xlu0 %v433, 127
        %v485 = vpop.permute.xlu0 %484
        %486 = vrot.lane.b32.xlu0 %v434, 127
        %v487 = vpop.permute.xlu0 %486
        %488 = vrot.lane.b32.xlu0 %v435, 127
        %v489 = vpop.permute.xlu0 %488
        %490 = vrot.lane.b32.xlu0 %v436, 127
        %v491 = vpop.permute.xlu0 %490
        %492 = vrot.lane.b32.xlu0 %v437, 127
        %v493 = vpop.permute.xlu0 %492
        %v502 = vsel %vm357, 0.0, %v479
        %v503 = vsel %vm357, 0.0, %v481
        %v504 = vsel %vm357, 0.0, %v483
        %v505 = vsel %vm357, 0.0, %v485
        %v506 = vsel %vm357, 0.0, %v487
        %v507 = vsel %vm357, 0.0, %v489
        %v508 = vsel %vm357, 0.0, %v491
        %v509 = vsel %vm357, 0.0, %v493
        %v510 = vsub.f32 %v348, %v382
        %v511 = vsub.f32 %v349, %v383
        %v512 = vsub.f32 %v350, %v384
        %v513 = vsub.f32 %v351, %v385
        %v514 = vsub.f32 %v352, %v386
        %v515 = vsub.f32 %v353, %v387
        %v516 = vsub.f32 %v354, %v388
        %v517 = vsub.f32 %v355, %v389
        %v518 = vmul.f32 %v257, 2.0
        %v519 = vmul.f32 %v258, 2.0
        %v520 = vmul.f32 %v259, 2.0
        %v521 = vmul.f32 %v260, 2.0
        %v522 = vmul.f32 %v261, 2.0
        %v523 = vmul.f32 %v262, 2.0
        %v524 = vmul.f32 %v263, 2.0
        %v525 = vmul.f32 %v264, 2.0
        %v526 = vadd.f32 %v470, %v518
        %v527 = vadd.f32 %v471, %v519
        %v528 = vadd.f32 %v472, %v520
        %v529 = vadd.f32 %v473, %v521
        %v530 = vadd.f32 %v474, %v522
        %v531 = vadd.f32 %v475, %v523
        %v532 = vadd.f32 %v476, %v524
        %v533 = vadd.f32 %v477, %v525
        %v534 = vadd.f32 %v526, %v502
        %v535 = vadd.f32 %v527, %v503
        %v536 = vadd.f32 %v528, %v504
        %v537 = vadd.f32 %v529, %v505
        %v538 = vadd.f32 %v530, %v506
        %v539 = vadd.f32 %v531, %v507
        %v540 = vadd.f32 %v532, %v508
        %v541 = vadd.f32 %v533, %v509
        %v542 = vand.u32 2147483647, %v510
        %v543 = vand.u32 2147483647, %v511
        %v544 = vand.u32 2147483647, %v512
        %v545 = vand.u32 2147483647, %v513
        %v546 = vand.u32 2147483647, %v514
        %v547 = vand.u32 2147483647, %v515
        %v548 = vand.u32 2147483647, %v516
        %v549 = vand.u32 2147483647, %v517
        %v550 = vand.u32 2147483647, %v534
        %v551 = vand.u32 2147483647, %v535
        %v552 = vand.u32 2147483647, %v536
        %v553 = vand.u32 2147483647, %v537
        %v554 = vand.u32 2147483647, %v538
        %v555 = vand.u32 2147483647, %v539
        %v556 = vand.u32 2147483647, %v540
        %v557 = vand.u32 2147483647, %v541
        %v558 = vadd.f32 %v542, %v550
        %v559 = vadd.f32 %v543, %v551
        %v560 = vadd.f32 %v544, %v552
        %v561 = vadd.f32 %v545, %v553
        %v562 = vadd.f32 %v546, %v554
        %v563 = vadd.f32 %v547, %v555
        %v564 = vadd.f32 %v548, %v556
        %v565 = vadd.f32 %v549, %v557
        %vm566 = vcmask 130048
        %567 = vst.msk [vmem:[%s153] sm:$0xff] %vm566, %v558
        %568 = vst.msk [vmem:[%s153 + $0x8] sm:$0xff] %vm566, %v559
        %569 = vst.msk [vmem:[%s153 + $0x10] sm:$0xff] %vm566, %v560
        %570 = vst.msk [vmem:[%s153 + $0x18] sm:$0xff] %vm566, %v561
        %571 = vst.msk [vmem:[%s153 + $0x20] sm:$0xff] %vm566, %v562
        %572 = vst.msk [vmem:[%s153 + $0x28] sm:$0xff] %vm566, %v563
        %573 = vst.msk [vmem:[%s153 + $0x30] sm:$0xff] %vm566, %v564
        %574 = vst.msk [vmem:[%s153 + $0x38] sm:$0xff] %vm566, %v565
        %s575 = sand.u32 %s68, 1
        %s576 = scalar_lea.sflag [#allocation4], %s575
        %s577 = sand.u32 %s68, 1
        %s578 = smul.addr %s577, 64
        %s579 = scalar_lea.vmem [#allocation5], %s578
        // Predicated region
        $region29: #{tpu_custom_call.1} parent=23 // pred_check
          %p580 = pneg %p78
        $region30: #{tpu_custom_call.1} parent=23 // pred_check_branch
          %582 = sbr.rel (%p580) target = $region32
        $region31: #{tpu_custom_call.1} parent=23 // pred_region
          %s583 = smul.u32 4, %s23
          %s585 = ssub.s32 1024, 1024
          %586 = vsyncadd %s576, %s585
          %s587 = smul.addr %s583, 2
          %s588 = smul.addr %s22, 8
          %s589 = sadd.s32 %s587, %s588
          %s590 = smul.addr %s589, 128
          %s591 = scalar_lea.hbm %s1, %s590
          %s592 = sshll.u32 %s579, 4
          %s593 = int_to_ptr.vmem [resolvable:$true] %s592
          %598 = dma.vmem_to_hbm [thread:$0]  %s593, 1024, %s591, %s576, 128, 128, 8
        $region32: #{tpu_custom_call.1} parent=23 // pred_fallthru
          _
      $region24: #{tpu_custom_call.1} parent=5 // pred_fallthru
        _
      %p599 = scmp.le.s32.totalorder 2, %s13
      // Predicated region
      $region33: #{tpu_custom_call.1} parent=5 // pred_check
        %p600 = pneg %p599
      $region34: #{tpu_custom_call.1} parent=5 // pred_check_branch
        %602 = sbr.rel (%p600) target = $region36
      $region35: #{tpu_custom_call.1} parent=5 // pred_region
        %s603 = ssub.s32 %s13, 2
        // Predicated region
        $region37: #{tpu_custom_call.1} parent=35 // pred_check
          %p604 = pneg %p84
        $region38: #{tpu_custom_call.1} parent=35 // pred_check_branch
          %606 = sbr.rel (%p604) target = $region40
        $region39: #{tpu_custom_call.1} parent=35 // pred_region
          %s607 = sand.u32 %s69, 1
          %s608 = scalar_lea.sflag [#allocation4], %s607
          %s609 = sand.u32 %s69, 1
          %s610 = smul.addr %s609, 64
          %s611 = scalar_lea.vmem [#allocation5], %s610
          %612 = dma.done %s608, 1024
        $region40: #{tpu_custom_call.1} parent=35 // pred_fallthru
          _
      $region36: #{tpu_custom_call.1} parent=5 // pred_fallthru
        _
    $region6: #{tpu_custom_call.1} parent=1 // loop_footer
      %s17 = sadd.s32 1, %s13
    $region7: #{tpu_custom_call.1} parent=1 // loop_footer_branch
      %12 = sbr.rel target = $region3
    $region8: #{tpu_custom_call.1} parent=1 // loop_exit
      _
    %613 = vsyncpa [#allocation3], 1
    %s614 = scalar_lea.sflag [#allocation3], 1
    %615 = vsyncpa %s614, 1
    %616 = vsyncpa [#allocation4], 1
    %s617 = scalar_lea.sflag [#allocation4], 1
    %618 = vsyncpa %s617, 1

</llo_original>
